<compile_context>
chip_gen: v7x
topology: tpu7x:2x2x1
jax: 0.10.0
libtpu: 0.0.40
codegen_flags: <defaults>
</compile_context>

<pallas_src>
import functools

import jax
import jax.numpy as jnp
from jax.experimental import pallas as pl
from jax.experimental.pallas import tpu as pltpu

_LANES = 128
_TM = 1024          # streaming row tile for the two-pass path (512 KiB f32)
_CHUNK_ROWS = 1024  # in-kernel chunk for the fused path (512 KiB f32)


def _round_up(n, m):
    return ((n + m - 1) // m) * m


def _vmem_capacity_bytes():
    try:
        cap = getattr(pltpu.get_tpu_info(), "vmem_capacity_bytes", None)
        if cap:
            return int(cap)
    except Exception:
        pass
    return 64 << 20  # conservative fallback (v7x per-TensorCore VMEM)


# -----------------------------------------------------------------------------
# Fused path: whole tensor resident in VMEM (single HBM read + single write).
# Manual DMA so the buffer is allocated exactly once (no pipeline double
# buffering); stats + quantization are chunked so temporaries stay ~512 KiB.
# -----------------------------------------------------------------------------
def _fused_kernel(x_hbm, o_hbm, buf, sem, *, w_bit, numel, rows):
    # ---- 1 HBM read: whole tensor -> VMEM (kept in its original dtype) ----
    cp_in = pltpu.make_async_copy(x_hbm, buf, sem)
    cp_in.start()
    cp_in.wait()

    full = rows // _CHUNK_ROWS
    rem = rows - full * _CHUNK_ROWS
    cnt = jnp.float32(numel)

    # ---- pass A (VMEM sweep): sum / sum-of-squares, chunked -----------------
    # Zero padding (ragged numel) is neutral for both sums.  Uncentered
    # variance is fine for near-zero-mean weights; f32 chunk-tree accumulation
    # keeps rounding error small.
    def chunk_sums(off, nrows):
        xc = buf[pl.ds(off, nrows), :].astype(jnp.float32)
        return jnp.sum(xc), jnp.sum(xc * xc)

    total = jnp.float32(0.0)
    sumsq = jnp.float32(0.0)
    if full > 0:
        def stats_body(c, carry):
            s, q = carry
            off = pl.multiple_of(c * _CHUNK_ROWS, _CHUNK_ROWS)
            ds_, dq_ = chunk_sums(off, _CHUNK_ROWS)
            return s + ds_, q + dq_
        total, sumsq = jax.lax.fori_loop(0, full, stats_body, (total, sumsq))
    if rem > 0:
        ds_, dq_ = chunk_sums(full * _CHUNK_ROWS, rem)
        total, sumsq = total + ds_, sumsq + dq_

    mean = total / cnt
    var = jnp.maximum((sumsq - cnt * mean * mean) / (cnt - 1.0), 0.0)
    inv_s_sqrt2 = jax.lax.rsqrt(2.0 * var)      # 1 / (std * sqrt(2))  (EUP rsqrt)

    # ---- pass B (VMEM sweep): CDF + uniform quantization, in place ----------
    if w_bit == 1:
        def quant(wcdf):
            return jnp.sign(wcdf)
    else:
        n = float(2 ** w_bit - 1)
        inv_n = 1.0 / n                          # multiply by constant, no divide
        def quant(wcdf):
            return jnp.round(wcdf * n) * inv_n

    def quant_chunk(off, nrows):
        xc = buf[pl.ds(off, nrows), :].astype(jnp.float32)
        wcdf = jax.lax.erf((xc - mean) * inv_s_sqrt2)   # == 2*Normal(m,s).cdf(x)-1
        buf[pl.ds(off, nrows), :] = quant(wcdf).astype(buf.dtype)

    if full > 0:
        def quant_body(c, carry):
            off = pl.multiple_of(c * _CHUNK_ROWS, _CHUNK_ROWS)
            quant_chunk(off, _CHUNK_ROWS)
            return carry
        jax.lax.fori_loop(0, full, quant_body, 0)
    if rem > 0:
        quant_chunk(full * _CHUNK_ROWS, rem)

    # ---- 1 HBM write --------------------------------------------------------
    cp_out = pltpu.make_async_copy(buf, o_hbm, sem)
    cp_out.start()
    cp_out.wait()


# -----------------------------------------------------------------------------
# Two-pass path for tensors too large to sit in VMEM.
# -----------------------------------------------------------------------------
def _stats_kernel(x_ref, sum_ref, sumsq_ref, acc_s, acc_q, *, rows, tm):
    """Streaming sum / sum-of-squares into tiny (1, 128) lane partials."""
    i = pl.program_id(0)

    @pl.when(i == 0)
    def _():
        acc_s[...] = jnp.zeros_like(acc_s)
        acc_q[...] = jnp.zeros_like(acc_q)

    x = x_ref[...].astype(jnp.float32)            # (tm, 128)
    if rows % tm != 0:
        # Last grid step sees a padded block whose out-of-bounds rows hold
        # stale VMEM data: mask them (static no-op when tm divides rows).
        valid = rows - i * tm
        row_id = jax.lax.broadcasted_iota(jnp.int32, x.shape, 0)
        x = jnp.where(row_id < valid, x, 0.0)

    acc_s[...] += jnp.sum(x, axis=0, keepdims=True)
    acc_q[...] += jnp.sum(x * x, axis=0, keepdims=True)

    @pl.when(i == pl.num_programs(0) - 1)
    def _():
        sum_ref[...] = acc_s[...]
        sumsq_ref[...] = acc_q[...]


def _quant_kernel(params_ref, x_ref, o_ref, *, w_bit):
    """Elementwise erf((x - m) * inv_s_sqrt2) + uniform quantization."""
    x = x_ref[...].astype(jnp.float32)
    m = params_ref[0]
    inv_s_sqrt2 = params_ref[1]
    weight_cdf = jax.lax.erf((x - m) * inv_s_sqrt2)
    if w_bit == 1:
        q = jnp.sign(weight_cdf)
    else:
        n = float(2 ** w_bit - 1)
        q = jnp.round(weight_cdf * n) * (1.0 / n)
    o_ref[...] = q.astype(o_ref.dtype)


def weight_quantize_fn(x, w_bit, *, force_two_pass=False, tile_rows=_TM):
    """Pallas implementation of weight_quantize_fn.forward."""
    if w_bit == 32:
        return x
    assert tile_rows % 8 == 0

    orig_shape = x.shape
    orig_dtype = x.dtype
    numel = int(x.size)
    itemsize = jnp.dtype(orig_dtype).itemsize

    # Present the tensor as (rows, 128).  When numel % 128 == 0 (typical for
    # conv / linear weights) this is a free row-major bitcast: no pad, no
    # output slice, no extra HBM traffic.
    if numel % _LANES == 0:
        rows = numel // _LANES
        x2 = x.reshape(rows, _LANES)
        padded = numel
    else:
        rows = pl.cdiv(numel, _LANES)
        padded = rows * _LANES
        # Ragged tensors are rare and small; zeros are neutral for sum/sumsq.
        x2 = jnp.pad(x.reshape(-1), (0, padded - numel)).reshape(rows, _LANES)

    cap = _vmem_capacity_bytes()
    buf_bytes = _round_up(rows, 16) * _LANES * itemsize   # resident VMEM buffer
    fused_need = buf_bytes + (16 << 20)                   # chunk temps + headroom
    fused_cap = min(cap * 3 // 4, 96 << 20)               # keep >=25% VMEM margin
    use_fused = (not force_two_pass) and (fused_need <= fused_cap)

    if use_fused:
        out2 = pl.pallas_call(
            functools.partial(_fused_kernel, w_bit=w_bit, numel=numel, rows=rows),
            out_shape=jax.ShapeDtypeStruct((rows, _LANES), orig_dtype),
            in_specs=[pl.BlockSpec(memory_space=pl.ANY)],
            out_specs=pl.BlockSpec(memory_space=pl.ANY),
            scratch_shapes=[
                pltpu.VMEM((rows, _LANES), orig_dtype),
                pltpu.SemaphoreType.DMA,
            ],
            compiler_params=pltpu.CompilerParams(
                vmem_limit_bytes=int(fused_need)),
        )(x2)
    else:
        tm = tile_rows if rows >= tile_rows else rows
        n_tiles = pl.cdiv(rows, tm)

        # --- pass 1: global sum / sum-of-squares (streaming, 512 KiB tiles) --
        sum_p, sumsq_p = pl.pallas_call(
            functools.partial(_stats_kernel, rows=rows, tm=tm),
            out_shape=(
                jax.ShapeDtypeStruct((1, _LANES), jnp.float32),
                jax.ShapeDtypeStruct((1, _LANES), jnp.float32),
            ),
            grid=(n_tiles,),
            in_specs=[pl.BlockSpec((tm, _LANES), lambda i: (i, 0))],
            out_specs=(
                pl.BlockSpec((1, _LANES), lambda i: (0, 0)),
                pl.BlockSpec((1, _LANES), lambda i: (0, 0)),
            ),
            scratch_shapes=[
                pltpu.VMEM((1, _LANES), jnp.float32),
                pltpu.VMEM((1, _LANES), jnp.float32),
            ],
            compiler_params=pltpu.CompilerParams(
                dimension_semantics=("arbitrary",)),
        )(x2)

        # --- glue: scalar mean / unbiased std (matches torch.mean / torch.std)
        cnt = jnp.float32(numel)
        total = jnp.sum(sum_p)
        sumsq = jnp.sum(sumsq_p)
        mean = total / cnt
        var = jnp.maximum((sumsq - cnt * mean * mean) / (cnt - 1.0), 0.0)
        inv_s_sqrt2 = jax.lax.rsqrt(2.0 * var)
        params = jnp.stack([mean, inv_s_sqrt2]).astype(jnp.float32)

        # --- pass 2: elementwise CDF + uniform quantization -------------------
        out2 = pl.pallas_call(
            functools.partial(_quant_kernel, w_bit=w_bit),
            out_shape=jax.ShapeDtypeStruct((rows, _LANES), orig_dtype),
            grid_spec=pltpu.PrefetchScalarGridSpec(
                num_scalar_prefetch=1,
                grid=(n_tiles,),
                in_specs=[pl.BlockSpec((tm, _LANES), lambda i, p: (i, 0))],
                out_specs=pl.BlockSpec((tm, _LANES), lambda i, p: (i, 0)),
            ),
            compiler_params=pltpu.CompilerParams(
                dimension_semantics=("parallel",)),
        )(params, x2)

    if padded == numel:
        return out2.reshape(orig_shape)
    return out2.reshape(-1)[:numel].reshape(orig_shape)


def _reference(x, w_bit):
    """Pure-JAX reference mirroring the PyTorch math."""
    if w_bit == 32:
        return x
    xf = x.astype(jnp.float32)
    m = jnp.mean(xf)
    s = jnp.std(xf, ddof=1)  # torch.std default is unbiased
    weight_cdf = jax.lax.erf((xf - m) / (s * jnp.sqrt(jnp.float32(2.0))))
    if w_bit == 1:
        return jnp.sign(weight_cdf)
    n = float(2 ** w_bit - 1)
    return jnp.round(weight_cdf * n) / n


if __name__ == "__main__":
    key = jax.random.PRNGKey(0)
    w_bit = 4
    step = 1.0 / (2 ** w_bit - 1)

    # deterministic synthetic conv weight, PyTorch OIHW layout: (O=16, I=8, kH=4, kW=4)
    w = jax.random.normal(key, (16, 8, 4, 4), dtype=jnp.float32) * 0.1
    ref = _reference(w, w_bit)

    # fused (VMEM-resident, manual-DMA) path
    out_fused = jax.block_until_ready(weight_quantize_fn(w, w_bit))
    assert out_fused.shape == w.shape and out_fused.dtype == w.dtype
    assert bool(jnp.all(jnp.isfinite(out_fused)))
    assert float(jnp.max(jnp.abs(out_fused - ref))) <= step + 1e-5

    # two-pass streaming path, small tile so several grid steps are exercised
    out_2p = jax.block_until_ready(
        weight_quantize_fn(w, w_bit, force_two_pass=True, tile_rows=8))
    assert float(jnp.max(jnp.abs(out_2p - ref))) <= step + 1e-5

    # partial last tile (rows=25, tile_rows=8) -> exercises the in-kernel row mask
    w_part = jax.random.normal(jax.random.PRNGKey(1), (25, 128), jnp.float32) * 0.05
    out_part = jax.block_until_ready(
        weight_quantize_fn(w_part, w_bit, force_two_pass=True, tile_rows=8))
    assert float(jnp.max(jnp.abs(out_part - _reference(w_part, w_bit)))) <= step + 1e-5

    # unaligned element count (numel % 128 != 0) -> zero-pad fallback path
    w_odd = jax.random.normal(jax.random.PRNGKey(2), (10, 3, 3, 3), jnp.float32) * 0.1
    out_odd = jax.block_until_ready(weight_quantize_fn(w_odd, w_bit))
    assert out_odd.shape == w_odd.shape
    assert float(jnp.max(jnp.abs(out_odd - _reference(w_odd, w_bit)))) <= step + 1e-5

    # bf16 input stays bf16 end-to-end (casts happen in-kernel, not in the wrapper)
    w_bf = w.astype(jnp.bfloat16)
    out_bf = jax.block_until_ready(weight_quantize_fn(w_bf, w_bit))
    assert out_bf.dtype == jnp.bfloat16
    assert float(jnp.max(jnp.abs(out_bf.astype(jnp.float32)
                                 - _reference(w_bf, w_bit)))) <= step + 1e-2

    # 1-bit sign path and 32-bit passthrough
    out1 = jax.block_until_ready(weight_quantize_fn(w, 1))
    assert float(jnp.mean(jnp.abs(out1 - _reference(w, 1)))) < 0.01
    assert weight_quantize_fn(w, 32) is w

    print("KERNEL_OK")
</pallas_src>

<mosaic_0001>
module attributes {stable_mosaic.version = 11 : i64} {
  func.func @_fused_kernel(%arg0: memref<16x128xf32, #tpu.memory_space<any>>, %arg1: memref<16x128xf32, #tpu.memory_space<any>>, %arg2: memref<16x128xf32, #tpu.memory_space<vmem>>, %arg3: memref<!tpu.dma_semaphore, #tpu.memory_space<semaphore_mem>>) attributes {dimension_semantics = [], scalar_prefetch = 0 : i64, scratch_operands = 2 : i64, tpu.core_type = #tpu.core_type<tc>} {
    tpu.enqueue_dma source(%arg0 : memref<16x128xf32, #tpu.memory_space<any>>) target(%arg2 : memref<16x128xf32, #tpu.memory_space<vmem>>) target_semaphore(%arg3 : memref<!tpu.dma_semaphore, #tpu.memory_space<semaphore_mem>>)
    tpu.wait_dma2 semaphore(%arg3 : memref<!tpu.dma_semaphore, #tpu.memory_space<semaphore_mem>>) src(%arg0 : memref<16x128xf32, #tpu.memory_space<any>>) dst(%arg2 : memref<16x128xf32, #tpu.memory_space<vmem>>)
    %c0 = arith.constant 0 : index
    %c0_0 = arith.constant 0 : index
    %0 = vector.load %arg2[%c0, %c0_0] : memref<16x128xf32, #tpu.memory_space<vmem>>, vector<16x128xf32>
    %1 = vector.shape_cast %0 : vector<16x128xf32> to vector<1x16x128xf32>
    %cst = arith.constant dense<0.000000e+00> : vector<1xf32>
    %2 = vector.multi_reduction <add>, %1, %cst [1, 2] : vector<1x16x128xf32> to vector<1xf32>
    %3 = vector.shape_cast %2 : vector<1xf32> to vector<1x1x1xf32>
    %4 = vector.extract %3[0, 0, 0] : f32 from vector<1x1x1xf32>
    %5 = arith.mulf %0, %0 : vector<16x128xf32>
    %6 = vector.shape_cast %5 : vector<16x128xf32> to vector<1x16x128xf32>
    %cst_1 = arith.constant dense<0.000000e+00> : vector<1xf32>
    %7 = vector.multi_reduction <add>, %6, %cst_1 [1, 2] : vector<1x16x128xf32> to vector<1xf32>
    %8 = vector.shape_cast %7 : vector<1xf32> to vector<1x1x1xf32>
    %9 = vector.extract %8[0, 0, 0] : f32 from vector<1x1x1xf32>
    %cst_2 = arith.constant 0.000000e+00 : f32
    %10 = arith.addf %cst_2, %4 : f32
    %cst_3 = arith.constant 0.000000e+00 : f32
    %11 = arith.addf %cst_3, %9 : f32
    %cst_4 = arith.constant 2.048000e+03 : f32
    %12 = arith.divf %10, %cst_4 : f32
    %cst_5 = arith.constant 2.048000e+03 : f32
    %13 = arith.mulf %cst_5, %12 : f32
    %14 = arith.mulf %13, %12 : f32
    %15 = arith.subf %11, %14 : f32
    %cst_6 = arith.constant 2.048000e+03 : f32
    %cst_7 = arith.constant 1.000000e+00 : f32
    %16 = arith.subf %cst_6, %cst_7 : f32
    %17 = arith.divf %15, %16 : f32
    %cst_8 = arith.constant 0.000000e+00 : f32
    %18 = arith.maximumf %17, %cst_8 : f32
    %cst_9 = arith.constant 2.000000e+00 : f32
    %19 = arith.mulf %cst_9, %18 : f32
    %20 = math.rsqrt %19 : f32
    %c0_10 = arith.constant 0 : index
    %c0_11 = arith.constant 0 : index
    %21 = vector.load %arg2[%c0_10, %c0_11] : memref<16x128xf32, #tpu.memory_space<vmem>>, vector<16x128xf32>
    %22 = vector.broadcast %12 : f32 to vector<16x128xf32>
    %23 = arith.subf %21, %22 : vector<16x128xf32>
    %24 = vector.broadcast %20 : f32 to vector<16x128xf32>
    %25 = arith.mulf %23, %24 : vector<16x128xf32>
    %26 = math.erf %25 : vector<16x128xf32>
    %cst_12 = arith.constant 1.500000e+01 : f32
    %27 = vector.broadcast %cst_12 : f32 to vector<16x128xf32>
    %28 = arith.mulf %26, %27 : vector<16x128xf32>
    %29 = math.roundeven %28 : vector<16x128xf32>
    %cst_13 = arith.constant 0.0666666701 : f32
    %30 = vector.broadcast %cst_13 : f32 to vector<16x128xf32>
    %31 = arith.mulf %29, %30 : vector<16x128xf32>
    %c0_14 = arith.constant 0 : index
    %c0_15 = arith.constant 0 : index
    %32 = vector.load %arg2[%c0_14, %c0_15] : memref<16x128xf32, #tpu.memory_space<vmem>>, vector<16x128xf32>
    tpu.vector_store %arg2[%c0_14, %c0_15], %31 {strides = array<i32>} : memref<16x128xf32, #tpu.memory_space<vmem>>, vector<16x128xf32>,
    tpu.enqueue_dma source(%arg2 : memref<16x128xf32, #tpu.memory_space<vmem>>) target(%arg1 : memref<16x128xf32, #tpu.memory_space<any>>) target_semaphore(%arg3 : memref<!tpu.dma_semaphore, #tpu.memory_space<semaphore_mem>>)
    tpu.wait_dma2 semaphore(%arg3 : memref<!tpu.dma_semaphore, #tpu.memory_space<semaphore_mem>>) src(%arg2 : memref<16x128xf32, #tpu.memory_space<vmem>>) dst(%arg1 : memref<16x128xf32, #tpu.memory_space<any>>)
    return
  }
}

</mosaic_0001>

<llo_original>
// kernel: tpu_custom_call.1
$region0: #{tpu_custom_call.1}
  #allocation0 [shape = 'u32[]', space=smem, size = 0x4, offset = 0x4, fixed_abs, tag = 'smem constant byte address 0x4 - core index']
  #allocation1 [shape = 'u32[144,128]{1,0:T(1,128)}', space=vmem, size = 0x12000, scoped, tag = 'internal scratch']
  #allocation2 [shape = 'f32[16,128]{1,0:T(8,128)}', space=vmem, size = 0x2000, scoped, tag = 'scratch operand']
  #allocation3 [shape = 's32[1]{0}', space=sflag, size = 0x4, scoped, tag = 'scratch operand']
  #allocation4 [shape = 's32[]', space=sflag, size = 0x4, offset = 0, fixed_abs, tag = 'sflag constant byte address 0x0 - dummy sync flag']
  #allocation5 [shape = 's32[]', space=sflag, size = 0x4, offset = 0, fixed_abs, tag = 'sflag constant byte address 0x0 - dummy sync flag']
  #allocation6 [shape = 'u32[]', space=smem, size = 0x4, offset = 0x44, fixed_abs, tag = 'smem constant byte address 0x44 - assertion arg 0']
  #allocation7 [shape = 'u32[]', space=smem, size = 0x4, offset = 0x48, fixed_abs, tag = 'smem constant byte address 0x48 - assertion arg 1']
  #allocation8 [shape = 's32[]', space=sflag, size = 0x4, offset = 0, fixed_abs, tag = 'sflag constant byte address 0x0 - dummy sync flag']
  #allocation9 [shape = 's32[]', space=sflag, size = 0x4, offset = 0, fixed_abs, tag = 'sflag constant byte address 0x0 - dummy sync flag']
  %s0 = inlined_call_operand.hbm [shape: f32[16,128], index: 0, kind: input, shape index: {}]
  %s1 = inlined_call_operand.hbm [shape: f32[16,128], index: 1, kind: output, shape index: {}]
  %s2 = sld [smem:[#allocation0]]
  $region10: #{tpu_custom_call.1} parent=0
    _
  %s4 = ssub.s32 1, %s2
  %s5 = scalar_select 0, %s4, %s2
  // Predicated region
  $region2: #{tpu_custom_call.1} parent=0 // pred_check
    _
  $region3: #{tpu_custom_call.1} parent=0 // pred_check_branch
    %7 = sbr.rel target = $region5
  $region4: #{tpu_custom_call.1} parent=0 // pred_region
    %8 = sst [smem:[#allocation6]] [#allocation5]
    %9 = sst [smem:[#allocation7]] [#allocation4]
  $region5: #{tpu_custom_call.1} parent=0 // pred_fallthru
    _
  %11 = shalt.err (0)
  %s13 = sshll.u32 [#allocation2], 4
  %s14 = int_to_ptr.vmem [resolvable:$true] %s13
  %16 = dma.hbm_to_vmem [thread:$0]  %s0, 256, %s14, [#allocation3]
  %s17 = smul.u32 16, 1
  %s18 = sshll.u32 %s17, 4
  %19 = dma.done [#allocation3], %s18
  %v20 = vld [vmem:[#allocation2] sm:$0xff]
  %v21 = vld [vmem:[#allocation2 + $0x8] sm:$0xff]
  %v22 = vadd.f32 %v20, %v21
  %23 = vadd.xlane.f32.xlu0 %v22
  %v24 = vpop.xlane.xlu0 %23
  %v25 = vrot.slane %v24, 4
  %v26 = vadd.f32 %v24, %v25
  %v27 = vrot.slane %v26, 2
  %v28 = vadd.f32 %v26, %v27
  %v29 = vrot.slane %v28, 1
  %v30 = vadd.f32 %v28, %v29
  %s31 = vtos %v30
  %v32 = vmul.f32 %v20, %v20
  %v33 = vmul.f32 %v21, %v21
  %v34 = vadd.f32 %v32, %v33
  %35 = vadd.xlane.f32.xlu0 %v34
  %v36 = vpop.xlane.xlu0 %35
  %v37 = vrot.slane %v36, 4
  %v38 = vadd.f32 %v36, %v37
  %v39 = vrot.slane %v38, 2
  %v40 = vadd.f32 %v38, %v39
  %v41 = vrot.slane %v40, 1
  %v42 = vadd.f32 %v40, %v41
  %s43 = vtos %v42
  %s44 = sadd.f32 %s31, 0.0
  %s45 = sadd.f32 %s43, 0.0
  %v46 = vrcp.pop 2048.0
  %s47 = vtos %v46
  %s48 = smul.f32 %s44, %s47
  %s49 = smul.f32 %s48, 2048.0
  %s50 = smul.f32 %s49, %s48
  %s51 = ssub.f32 %s45, %s50
  %v52 = vrcp.pop 2047.0
  %s53 = vtos %v52
  %s54 = smul.f32 %s51, %s53
  %s55 = smax.f32 %s54, 0.0
  %s56 = smul.f32 %s55, 2.0
  %v57 = vstv %s56
  %v58 = vrsqrt.pop %v57
  %s59 = vtos %v58
  %v60 = vstv %s48
  %v61 = vsub.f32 %v20, %v60
  %v62 = vsub.f32 %v21, %v60
  %v63 = vstv %s59
  %v64 = vmul.f32 %v61, %v63
  %v65 = vmul.f32 %v62, %v63
  %v66 = verf.f32.pop %v64
  %v67 = verf.f32.pop %v65
  %v68 = vmul.f32 %v66, 15.0
  %v69 = vmul.f32 %v67, 15.0
  %v70 = vround.ne.pseudo %v68
  %v71 = vround.ne.pseudo %v69
  %v72 = vmul.f32 %v70, 0.06666667
  %v73 = vmul.f32 %v71, 0.06666667
  %74 = vst [vmem:[#allocation2] sm:$0xff] %v72
  %75 = vst [vmem:[#allocation2 + $0x8] sm:$0xff] %v73
  // Predicated region
  $region6: #{tpu_custom_call.1} parent=0 // pred_check
    _
  $region7: #{tpu_custom_call.1} parent=0 // pred_check_branch
    %77 = sbr.rel target = $region9
  $region8: #{tpu_custom_call.1} parent=0 // pred_region
    %78 = sst [smem:[#allocation6]] [#allocation9]
    %79 = sst [smem:[#allocation7]] [#allocation8]
  $region9: #{tpu_custom_call.1} parent=0 // pred_fallthru
    _
  %81 = shalt.err (0)
  %s83 = sshll.u32 [#allocation2], 4
  %s84 = int_to_ptr.vmem [resolvable:$true] %s83
  %86 = dma.vmem_to_hbm [thread:$0]  %s84, 256, %s1, [#allocation3]
  %s87 = sshll.u32 %s17, 4
  %88 = dma.done [#allocation3], %s87
  %89 = vsyncmov [#allocation3]
  %s90 = vpop.sfrf %89
  %p91 = scmp.eq.s32.totalorder %s90, 0
  %p92 = pneg %p91
  %94 = shalt.err (%p92)

</llo_original>
